<compile_context>
chip_gen: v7x
topology: tpu7x:2x2x1
jax: 0.10.0
libtpu: 0.0.40
codegen_flags: <defaults>
</compile_context>

<pallas_src>
import functools

import jax
import jax.numpy as jnp
from jax.experimental import pallas as pl
from jax.experimental.pallas import tpu as pltpu

# ----- model hyper-parameters (FCResNet defaults, small num_outputs) -----
IN_CHANNELS = 4
NUM_FEATURES = 128
DEPTH = 4
NUM_OUTPUTS = 16
SNORM_COEFF = 0.95
N_POWER_ITERATIONS = 1
BATCH = 8

_LANE = 128


def _round_up(n, m):
    return ((n + m - 1) // m) * m


def _default_carry_dtype():
    """bf16 residual carry on chips with a bf16 VPU (v6e/v7x); f32 on v5e and older."""
    try:
        kind = jax.devices()[0].device_kind.lower()
    except Exception:
        return jnp.float32
    if any(tag in kind for tag in ("v2", "v3", "v4", "v5")):
        return jnp.float32
    return jnp.bfloat16


def _pick_batch_tiling(batch, block_b):
    """Batch tile (multiple of 8) and padded batch.

    Ensures >= 2 grid steps once batch >= 16 (so the "parallel" grid axis can shard
    across v7x's two TensorCores) and sizes tiles so the last tile carries minimal
    padding.  Large batches get tiles up to `block_b` rows.
    """
    if batch >= 16:
        n_tiles = max(2, -(-batch // block_b))
    else:
        n_tiles = 1
    bb = _round_up(-(-batch // n_tiles), 8)
    return bb, bb * n_tiles, n_tiles


# ------------------------- Pallas kernel -------------------------
def _fc_resnet_kernel(x_ref, fw_ref, fb_ref, rw_ref, rb_ref, lw_ref, lb_ref,
                      o_ref, *, depth, num_outputs, carry_dtype):
    # first linear: [bb, in_ch] (f32 -> bf16) @ [in_ch, F] (bf16), f32 MXU accumulate.
    x = jnp.dot(x_ref[...].astype(jnp.bfloat16), fw_ref[...],
                preferred_element_type=jnp.float32).astype(carry_dtype)
    x = x + fb_ref[...].astype(carry_dtype)
    # residual blocks: x = x + relu(Linear(x)); Dropout(p=0.01) == identity in eval.
    # depth is small & static -> fully unrolled so the scheduler sees the whole chain.
    for d in range(depth):
        h = jnp.dot(x.astype(jnp.bfloat16), rw_ref[d],
                    preferred_element_type=jnp.float32).astype(carry_dtype)
        h = h + rb_ref[d].astype(carry_dtype)
        x = x + jnp.maximum(h, 0.0)          # ReLU + residual add in carry dtype
    # last linear: lane-dense [F, 128] rhs (zero-padded cols); slice the real outputs
    # and store a narrow f32 block (lane dim == full out-array dim -> legal BlockSpec).
    out = jnp.dot(x.astype(jnp.bfloat16), lw_ref[...],
                  preferred_element_type=jnp.float32)
    o_ref[...] = (out[:, :num_outputs] + lb_ref[...]).astype(o_ref.dtype)
    # TODO(synk): training-mode dropout (stateful RNG mask) not implemented; forward
    # here matches eval() semantics.


def fc_resnet_forward(x, params, *, block_b=1024, carry_dtype=None):
    """x: [batch, in_channels] f32 (unpadded). params: kernel-layout params."""
    fw, fb, rw, rb, lw, lb = params
    batch, in_ch = x.shape
    depth, nf, _ = rw.shape
    n_pad = lw.shape[1]          # last-layer rhs lane-padded width (128)
    num_outputs = lb.shape[1]    # real output width (16)
    if carry_dtype is None:
        carry_dtype = _default_carry_dtype()

    bb, padded_batch, n_tiles = _pick_batch_tiling(batch, block_b)
    if padded_batch != batch:
        # rows-only zero pad of the narrow input; ~16 B/row, no lane padding.
        x = jnp.pad(x, ((0, padded_batch - batch), (0, 0)))

    kernel = functools.partial(_fc_resnet_kernel, depth=depth,
                               num_outputs=num_outputs, carry_dtype=carry_dtype)
    out = pl.pallas_call(
        kernel,
        out_shape=jax.ShapeDtypeStruct((padded_batch, num_outputs), jnp.float32),
        grid=(n_tiles,),
        in_specs=[
            pl.BlockSpec((bb, in_ch), lambda i: (i, 0)),          # x tile (unpadded)
            pl.BlockSpec((in_ch, nf), lambda i: (0, 0)),          # first W (resident)
            pl.BlockSpec((1, nf), lambda i: (0, 0)),              # first b
            pl.BlockSpec((depth, nf, nf), lambda i: (0, 0, 0)),   # residual Ws
            pl.BlockSpec((depth, 1, nf), lambda i: (0, 0, 0)),    # residual bs
            pl.BlockSpec((nf, n_pad), lambda i: (0, 0)),          # last W (lane-dense)
            pl.BlockSpec((1, num_outputs), lambda i: (0, 0)),     # last b (narrow)
        ],
        out_specs=pl.BlockSpec((bb, num_outputs), lambda i: (i, 0)),
        compiler_params=pltpu.CompilerParams(
            dimension_semantics=("parallel",)),
    )(x, fw, fb, rw, rb, lw, lb)
    return out if padded_batch == batch else out[:batch]


# ------------------------- parameter setup (plain-JAX glue) -------------------------
def _linear_init(key, fan_in, fan_out):
    """PyTorch nn.Linear default init: U(-1/sqrt(fan_in), 1/sqrt(fan_in))."""
    kw, kb = jax.random.split(key)
    bound = 1.0 / jnp.sqrt(float(fan_in))
    w = jax.random.uniform(kw, (fan_out, fan_in), jnp.float32, -bound, bound)
    b = jax.random.uniform(kb, (fan_out,), jnp.float32, -bound, bound)
    return w, b


def _spectral_norm_fc(w, key, coeff=SNORM_COEFF, n_iter=N_POWER_ITERATIONS):
    """Soft spectral normalization: W / max(1, sigma/coeff), sigma via power iteration.

    Note: PyTorch's spectral_norm_fc carries `u` across forward passes; here it is
    applied once at parameter-build time (deterministic inference preprocessing).
    """
    u = jax.random.normal(key, (w.shape[0],), jnp.float32)
    u = u / (jnp.linalg.norm(u) + 1e-12)
    v = None
    for _ in range(n_iter):
        v = w.T @ u
        v = v / (jnp.linalg.norm(v) + 1e-12)
        u = w @ v
        u = u / (jnp.linalg.norm(u) + 1e-12)
    sigma = u @ (w @ v)
    factor = jnp.maximum(1.0, sigma / coeff)
    return w / factor


def make_params(key):
    """Returns (kernel_params, f32_params).

    kernel_params: [in, out]-layout bf16 weights (last W lane-padded to 128) and f32
                   biases, shaped for VMEM residency in the Pallas kernel.
    f32_params:    plain float32 [in, out] weights/biases for the pure-f32 reference.
    """
    n_pad = _round_up(NUM_OUTPUTS, _LANE)
    keys = jax.random.split(key, 3 + 2 * DEPTH)

    # first: Linear(IN_CHANNELS, NUM_FEATURES) + spectral norm.
    fw_pt, fb = _linear_init(keys[0], IN_CHANNELS, NUM_FEATURES)
    fw_pt = _spectral_norm_fc(fw_pt, keys[1])
    fw_f32 = fw_pt.T                                    # [in_ch, F]

    # residuals: DEPTH x Linear(NUM_FEATURES, NUM_FEATURES) + spectral norm.
    rws, rbs = [], []
    for d in range(DEPTH):
        w_pt, b = _linear_init(keys[2 + 2 * d], NUM_FEATURES, NUM_FEATURES)
        w_pt = _spectral_norm_fc(w_pt, keys[3 + 2 * d])
        rws.append(w_pt.T)
        rbs.append(b)
    rw_f32 = jnp.stack(rws)                             # [D, F, F]
    rb_f32 = jnp.stack(rbs)                             # [D, F]

    # last: Linear(NUM_FEATURES, NUM_OUTPUTS) (no spectral norm); rhs lane-padded.
    lw_pt, lb = _linear_init(keys[2 + 2 * DEPTH], NUM_FEATURES, NUM_OUTPUTS)
    lw_f32 = lw_pt.T                                    # [F, Nout]
    lw_pad = jnp.zeros((NUM_FEATURES, n_pad), jnp.float32).at[:, :NUM_OUTPUTS].set(lw_f32)

    kernel_params = (
        fw_f32.astype(jnp.bfloat16),                    # [in_ch, F]  bf16
        fb.reshape(1, NUM_FEATURES),                    # [1, F]      f32
        rw_f32.astype(jnp.bfloat16),                    # [D, F, F]   bf16
        rb_f32.reshape(DEPTH, 1, NUM_FEATURES),         # [D, 1, F]   f32
        lw_pad.astype(jnp.bfloat16),                    # [F, 128]    bf16 (zero cols)
        lb.reshape(1, NUM_OUTPUTS),                     # [1, Nout]   f32
    )
    f32_params = (fw_f32, fb, rw_f32, rb_f32, lw_f32, lb)
    return kernel_params, f32_params


# ------------------------- references (pure JAX) for sanity -------------------------
def _reference_mirrored(x, kparams, carry_dtype, num_outputs=NUM_OUTPUTS):
    """Mirrors the kernel numerics (bf16 matmul operands, f32 MXU accum, carry dtype)."""
    fw, fb, rw, rb, lw, lb = kparams
    h = jnp.dot(x.astype(jnp.bfloat16), fw,
                preferred_element_type=jnp.float32).astype(carry_dtype)
    h = h + fb.astype(carry_dtype)
    for d in range(rw.shape[0]):
        t = jnp.dot(h.astype(jnp.bfloat16), rw[d],
                    preferred_element_type=jnp.float32).astype(carry_dtype)
        t = t + rb[d].astype(carry_dtype)
        h = h + jnp.maximum(t, 0.0)
    out = jnp.dot(h.astype(jnp.bfloat16), lw, preferred_element_type=jnp.float32)
    return out[:, :num_outputs] + lb


def _reference_f32(x, fparams):
    """Pure float32 FCResNet forward (eval mode) — fidelity check vs. the true model."""
    fw, fb, rw, rb, lw, lb = fparams
    h = x @ fw + fb
    for d in range(rw.shape[0]):
        h = h + jnp.maximum(h @ rw[d] + rb[d], 0.0)
    return h @ lw + lb


if __name__ == "__main__":
    key = jax.random.PRNGKey(0)
    kx, kp = jax.random.split(key)
    x = jax.random.normal(kx, (BATCH, IN_CHANNELS), jnp.float32)
    kernel_params, f32_params = make_params(kp)

    carry = _default_carry_dtype()
    out = fc_resnet_forward(x, kernel_params, carry_dtype=carry)
    out = jax.block_until_ready(out)
    assert out.shape == (BATCH, NUM_OUTPUTS), out.shape

    # Tight check vs. a reference that mirrors the kernel's numerics exactly.
    ref_m = _reference_mirrored(x, kernel_params, carry)
    assert jnp.allclose(out, ref_m, atol=2e-3, rtol=2e-3), "mismatch vs mirrored ref"

    # Loose fidelity check vs. the pure-f32 FCResNet forward (bf16 weights / carry
    # introduce ~1%-level deviations from the true f32 model).
    ref_f = _reference_f32(x, f32_params)
    assert jnp.allclose(out, ref_f, atol=1e-1, rtol=1e-1), "mismatch vs f32 ref"

    print("KERNEL_OK")
</pallas_src>

<mosaic_0001>
module attributes {stable_mosaic.version = 11 : i64} {
  func.func @_fc_resnet_kernel(%arg0: i32, %arg1: memref<8x4xf32, #tpu.memory_space<vmem>>, %arg2: memref<4x128xbf16, #tpu.memory_space<vmem>>, %arg3: memref<1x128xf32, #tpu.memory_space<vmem>>, %arg4: memref<4x128x128xbf16, #tpu.memory_space<vmem>>, %arg5: memref<4x1x128xf32, #tpu.memory_space<vmem>>, %arg6: memref<128x128xbf16, #tpu.memory_space<vmem>>, %arg7: memref<1x16xf32, #tpu.memory_space<vmem>>, %arg8: memref<8x16xf32, #tpu.memory_space<vmem>>) attributes {dimension_semantics = [#tpu.dimension_semantics<parallel>], iteration_bounds = array<i64: 1>, scalar_prefetch = 0 : i64, scratch_operands = 0 : i64, tpu.core_type = #tpu.core_type<tc>, window_params = [{transform_indices = @transform_0, window_bounds = array<i64: 8, 4>}, {pipeline_mode = #tpu.pipeline_mode<synchronous>, transform_indices = @transform_1, window_bounds = array<i64: 4, 128>}, {pipeline_mode = #tpu.pipeline_mode<synchronous>, transform_indices = @transform_2, window_bounds = array<i64: 1, 128>}, {pipeline_mode = #tpu.pipeline_mode<synchronous>, transform_indices = @transform_3, window_bounds = array<i64: 4, 128, 128>}, {pipeline_mode = #tpu.pipeline_mode<synchronous>, transform_indices = @transform_4, window_bounds = array<i64: 4, 1, 128>}, {pipeline_mode = #tpu.pipeline_mode<synchronous>, transform_indices = @transform_5, window_bounds = array<i64: 128, 128>}, {pipeline_mode = #tpu.pipeline_mode<synchronous>, transform_indices = @transform_6, window_bounds = array<i64: 1, 16>}, {transform_indices = @transform_7, window_bounds = array<i64: 8, 16>}]} {
    %c0 = arith.constant 0 : index
    %c0_0 = arith.constant 0 : index
    %0 = vector.load %arg1[%c0, %c0_0] : memref<8x4xf32, #tpu.memory_space<vmem>>, vector<8x4xf32>
    %1 = arith.truncf %0 : vector<8x4xf32> to vector<8x4xbf16>
    %c0_1 = arith.constant 0 : index
    %c0_2 = arith.constant 0 : index
    %2 = vector.load %arg2[%c0_1, %c0_2] : memref<4x128xbf16, #tpu.memory_space<vmem>>, vector<4x128xbf16>
    %cst = arith.constant dense<0.000000e+00> : vector<8x128xf32>
    %3 = tpu.matmul %1, %2, %cst {dimension_numbers = #tpu.dot_dimension_numbers<[1], [0], [0], [1], [0, 0, 1, 1], [], []>} : vector<8x4xbf16>, vector<4x128xbf16>, vector<8x128xf32> -> vector<8x128xf32>
    %4 = arith.truncf %3 : vector<8x128xf32> to vector<8x128xbf16>
    %c0_3 = arith.constant 0 : index
    %c0_4 = arith.constant 0 : index
    %5 = vector.load %arg3[%c0_3, %c0_4] : memref<1x128xf32, #tpu.memory_space<vmem>>, vector<1x128xf32>
    %6 = arith.truncf %5 : vector<1x128xf32> to vector<1x128xbf16>
    %7 = vector.broadcast %6 : vector<1x128xbf16> to vector<8x128xbf16>
    %8 = arith.addf %4, %7 : vector<8x128xbf16>
    %c0_5 = arith.constant 0 : index
    %c0_6 = arith.constant 0 : index
    %c0_7 = arith.constant 0 : index
    %9 = vector.load %arg4[%c0_5, %c0_6, %c0_7] : memref<4x128x128xbf16, #tpu.memory_space<vmem>>, vector<1x128x128xbf16>
    %10 = vector.shape_cast %9 : vector<1x128x128xbf16> to vector<128x128xbf16>
    %cst_8 = arith.constant dense<0.000000e+00> : vector<8x128xf32>
    %11 = tpu.matmul %8, %10, %cst_8 {dimension_numbers = #tpu.dot_dimension_numbers<[1], [0], [0], [1], [0, 0, 1, 1], [], []>} : vector<8x128xbf16>, vector<128x128xbf16>, vector<8x128xf32> -> vector<8x128xf32>
    %12 = arith.truncf %11 : vector<8x128xf32> to vector<8x128xbf16>
    %c0_9 = arith.constant 0 : index
    %c0_10 = arith.constant 0 : index
    %c0_11 = arith.constant 0 : index
    %13 = vector.load %arg5[%c0_9, %c0_10, %c0_11] : memref<4x1x128xf32, #tpu.memory_space<vmem>>, vector<1x1x128xf32>
    %14 = vector.shape_cast %13 : vector<1x1x128xf32> to vector<1x128xf32>
    %15 = arith.truncf %14 : vector<1x128xf32> to vector<1x128xbf16>
    %16 = vector.broadcast %15 : vector<1x128xbf16> to vector<8x128xbf16>
    %17 = arith.addf %12, %16 : vector<8x128xbf16>
    %cst_12 = arith.constant 0.000000e+00 : bf16
    %18 = vector.broadcast %cst_12 : bf16 to vector<8x128xbf16>
    %19 = arith.maximumf %17, %18 : vector<8x128xbf16>
    %20 = arith.addf %8, %19 : vector<8x128xbf16>
    %c1 = arith.constant 1 : index
    %c0_13 = arith.constant 0 : index
    %c0_14 = arith.constant 0 : index
    %21 = vector.load %arg4[%c1, %c0_13, %c0_14] : memref<4x128x128xbf16, #tpu.memory_space<vmem>>, vector<1x128x128xbf16>
    %22 = vector.shape_cast %21 : vector<1x128x128xbf16> to vector<128x128xbf16>
    %cst_15 = arith.constant dense<0.000000e+00> : vector<8x128xf32>
    %23 = tpu.matmul %20, %22, %cst_15 {dimension_numbers = #tpu.dot_dimension_numbers<[1], [0], [0], [1], [0, 0, 1, 1], [], []>} : vector<8x128xbf16>, vector<128x128xbf16>, vector<8x128xf32> -> vector<8x128xf32>
    %24 = arith.truncf %23 : vector<8x128xf32> to vector<8x128xbf16>
    %c1_16 = arith.constant 1 : index
    %c0_17 = arith.constant 0 : index
    %c0_18 = arith.constant 0 : index
    %25 = vector.load %arg5[%c1_16, %c0_17, %c0_18] : memref<4x1x128xf32, #tpu.memory_space<vmem>>, vector<1x1x128xf32>
    %26 = vector.shape_cast %25 : vector<1x1x128xf32> to vector<1x128xf32>
    %27 = arith.truncf %26 : vector<1x128xf32> to vector<1x128xbf16>
    %28 = vector.broadcast %27 : vector<1x128xbf16> to vector<8x128xbf16>
    %29 = arith.addf %24, %28 : vector<8x128xbf16>
    %cst_19 = arith.constant 0.000000e+00 : bf16
    %30 = vector.broadcast %cst_19 : bf16 to vector<8x128xbf16>
    %31 = arith.maximumf %29, %30 : vector<8x128xbf16>
    %32 = arith.addf %20, %31 : vector<8x128xbf16>
    %c2 = arith.constant 2 : index
    %c0_20 = arith.constant 0 : index
    %c0_21 = arith.constant 0 : index
    %33 = vector.load %arg4[%c2, %c0_20, %c0_21] : memref<4x128x128xbf16, #tpu.memory_space<vmem>>, vector<1x128x128xbf16>
    %34 = vector.shape_cast %33 : vector<1x128x128xbf16> to vector<128x128xbf16>
    %cst_22 = arith.constant dense<0.000000e+00> : vector<8x128xf32>
    %35 = tpu.matmul %32, %34, %cst_22 {dimension_numbers = #tpu.dot_dimension_numbers<[1], [0], [0], [1], [0, 0, 1, 1], [], []>} : vector<8x128xbf16>, vector<128x128xbf16>, vector<8x128xf32> -> vector<8x128xf32>
    %36 = arith.truncf %35 : vector<8x128xf32> to vector<8x128xbf16>
    %c2_23 = arith.constant 2 : index
    %c0_24 = arith.constant 0 : index
    %c0_25 = arith.constant 0 : index
    %37 = vector.load %arg5[%c2_23, %c0_24, %c0_25] : memref<4x1x128xf32, #tpu.memory_space<vmem>>, vector<1x1x128xf32>
    %38 = vector.shape_cast %37 : vector<1x1x128xf32> to vector<1x128xf32>
    %39 = arith.truncf %38 : vector<1x128xf32> to vector<1x128xbf16>
    %40 = vector.broadcast %39 : vector<1x128xbf16> to vector<8x128xbf16>
    %41 = arith.addf %36, %40 : vector<8x128xbf16>
    %cst_26 = arith.constant 0.000000e+00 : bf16
    %42 = vector.broadcast %cst_26 : bf16 to vector<8x128xbf16>
    %43 = arith.maximumf %41, %42 : vector<8x128xbf16>
    %44 = arith.addf %32, %43 : vector<8x128xbf16>
    %c3 = arith.constant 3 : index
    %c0_27 = arith.constant 0 : index
    %c0_28 = arith.constant 0 : index
    %45 = vector.load %arg4[%c3, %c0_27, %c0_28] : memref<4x128x128xbf16, #tpu.memory_space<vmem>>, vector<1x128x128xbf16>
    %46 = vector.shape_cast %45 : vector<1x128x128xbf16> to vector<128x128xbf16>
    %cst_29 = arith.constant dense<0.000000e+00> : vector<8x128xf32>
    %47 = tpu.matmul %44, %46, %cst_29 {dimension_numbers = #tpu.dot_dimension_numbers<[1], [0], [0], [1], [0, 0, 1, 1], [], []>} : vector<8x128xbf16>, vector<128x128xbf16>, vector<8x128xf32> -> vector<8x128xf32>
    %48 = arith.truncf %47 : vector<8x128xf32> to vector<8x128xbf16>
    %c3_30 = arith.constant 3 : index
    %c0_31 = arith.constant 0 : index
    %c0_32 = arith.constant 0 : index
    %49 = vector.load %arg5[%c3_30, %c0_31, %c0_32] : memref<4x1x128xf32, #tpu.memory_space<vmem>>, vector<1x1x128xf32>
    %50 = vector.shape_cast %49 : vector<1x1x128xf32> to vector<1x128xf32>
    %51 = arith.truncf %50 : vector<1x128xf32> to vector<1x128xbf16>
    %52 = vector.broadcast %51 : vector<1x128xbf16> to vector<8x128xbf16>
    %53 = arith.addf %48, %52 : vector<8x128xbf16>
    %cst_33 = arith.constant 0.000000e+00 : bf16
    %54 = vector.broadcast %cst_33 : bf16 to vector<8x128xbf16>
    %55 = arith.maximumf %53, %54 : vector<8x128xbf16>
    %56 = arith.addf %44, %55 : vector<8x128xbf16>
    %c0_34 = arith.constant 0 : index
    %c0_35 = arith.constant 0 : index
    %57 = vector.load %arg6[%c0_34, %c0_35] : memref<128x128xbf16, #tpu.memory_space<vmem>>, vector<128x128xbf16>
    %cst_36 = arith.constant dense<0.000000e+00> : vector<8x128xf32>
    %58 = tpu.matmul %56, %57, %cst_36 {dimension_numbers = #tpu.dot_dimension_numbers<[1], [0], [0], [1], [0, 0, 1, 1], [], []>} : vector<8x128xbf16>, vector<128x128xbf16>, vector<8x128xf32> -> vector<8x128xf32>
    %59 = vector.extract_strided_slice %58 {offsets = [0, 0], sizes = [8, 16], strides = [1, 1]} : vector<8x128xf32> to vector<8x16xf32>
    %c0_37 = arith.constant 0 : index
    %c0_38 = arith.constant 0 : index
    %60 = vector.load %arg7[%c0_37, %c0_38] : memref<1x16xf32, #tpu.memory_space<vmem>>, vector<1x16xf32>
    %61 = vector.broadcast %60 : vector<1x16xf32> to vector<8x16xf32>
    %62 = arith.addf %59, %61 : vector<8x16xf32>
    %c0_39 = arith.constant 0 : index
    %c0_40 = arith.constant 0 : index
    %63 = vector.load %arg8[%c0_39, %c0_40] : memref<8x16xf32, #tpu.memory_space<vmem>>, vector<8x16xf32>
    tpu.vector_store %arg8[%c0_39, %c0_40], %62 {strides = array<i32>} : memref<8x16xf32, #tpu.memory_space<vmem>>, vector<8x16xf32>,
    return
  }
  func.func @transform_0(%arg0: i32) -> (i32, i32) {
    %c0_i32 = arith.constant 0 : i32
    %c0_i32_0 = arith.constant 0 : i32
    return %arg0, %c0_i32 : i32, i32
  }
  func.func @transform_1(%arg0: i32) -> (i32, i32) {
    %c0_i32 = arith.constant 0 : i32
    %c0_i32_0 = arith.constant 0 : i32
    %c0_i32_1 = arith.constant 0 : i32
    return %c0_i32, %c0_i32_0 : i32, i32
  }
  func.func @transform_2(%arg0: i32) -> (i32, i32) {
    %c0_i32 = arith.constant 0 : i32
    %c0_i32_0 = arith.constant 0 : i32
    %c0_i32_1 = arith.constant 0 : i32
    return %c0_i32, %c0_i32_0 : i32, i32
  }
  func.func @transform_3(%arg0: i32) -> (i32, i32, i32) {
    %c0_i32 = arith.constant 0 : i32
    %c0_i32_0 = arith.constant 0 : i32
    %c0_i32_1 = arith.constant 0 : i32
    %c0_i32_2 = arith.constant 0 : i32
    return %c0_i32, %c0_i32_0, %c0_i32_1 : i32, i32, i32
  }
  func.func @transform_4(%arg0: i32) -> (i32, i32, i32) {
    %c0_i32 = arith.constant 0 : i32
    %c0_i32_0 = arith.constant 0 : i32
    %c0_i32_1 = arith.constant 0 : i32
    %c0_i32_2 = arith.constant 0 : i32
    return %c0_i32, %c0_i32_0, %c0_i32_1 : i32, i32, i32
  }
  func.func @transform_5(%arg0: i32) -> (i32, i32) {
    %c0_i32 = arith.constant 0 : i32
    %c0_i32_0 = arith.constant 0 : i32
    %c0_i32_1 = arith.constant 0 : i32
    return %c0_i32, %c0_i32_0 : i32, i32
  }
  func.func @transform_6(%arg0: i32) -> (i32, i32) {
    %c0_i32 = arith.constant 0 : i32
    %c0_i32_0 = arith.constant 0 : i32
    %c0_i32_1 = arith.constant 0 : i32
    return %c0_i32, %c0_i32_0 : i32, i32
  }
  func.func @transform_7(%arg0: i32) -> (i32, i32) {
    %c0_i32 = arith.constant 0 : i32
    %c0_i32_0 = arith.constant 0 : i32
    return %arg0, %c0_i32 : i32, i32
  }
}

</mosaic_0001>

<llo_original>
// kernel: tpu_custom_call.1
$region0: #{tpu_custom_call.1}
  #allocation0 [shape = 'u32[]', space=smem, size = 0x4, offset = 0x4, fixed_abs, tag = 'smem constant byte address 0x4 - core index']
  #allocation1 [shape = 'u32[144,128]{1,0:T(1,128)}', space=vmem, size = 0x12000, scoped, tag = 'internal scratch']
  %s0 = inlined_call_operand.vmem [shape: f32[8,4], index: 0, kind: input, shape index: {}]
  %s1 = inlined_call_operand.vmem [shape: bf16[4,128], index: 1, kind: input, shape index: {}]
  %s2 = inlined_call_operand.vmem [shape: f32[1,128], index: 2, kind: input, shape index: {}]
  %s3 = inlined_call_operand.hbm [shape: bf16[4,128,128], index: 3, kind: input, shape index: {}]
  %s4 = inlined_call_operand.vmem [shape: f32[4,1,128], index: 4, kind: input, shape index: {}]
  %s5 = inlined_call_operand.hbm [shape: bf16[128,128], index: 5, kind: input, shape index: {}]
  %s6 = inlined_call_operand.vmem [shape: f32[1,16], index: 6, kind: input, shape index: {}]
  %s7 = inlined_call_operand.hbm [shape: f32[8,16], index: 7, kind: output, shape index: {}]
  %s8 = sld [smem:[#allocation0]]
  $region46: #{tpu_custom_call.1} parent=0
    _
  %s10 = ssub.s32 1, %s8
  %s11 = scalar_select 0, %s10, %s8
  $region1: #{tpu_custom_call.1} parent=0
    #allocation2 [shape = 'u8[131072]{0}', space=vmem, size = 0x20000, scoped, tag = 'input window, operand 3, single buffered']
    #allocation3 [shape = 's32[1]{0}', space=sflag, size = 0x4, scoped, tag = 'scoped memory for tpu_custom_call.1']
    #allocation4 [shape = 's32[1]{0}', space=sflag, size = 0x4, scoped, tag = 'scoped memory for tpu_custom_call.1']
    #allocation5 [shape = 'u8[32768]{0}', space=vmem, size = 0x8000, scoped, tag = 'input window, operand 5, single buffered']
    #allocation6 [shape = 's32[1]{0}', space=sflag, size = 0x4, scoped, tag = 'scoped memory for tpu_custom_call.1']
    #allocation7 [shape = 'u8[4096]{0}', space=vmem, size = 0x1000, scoped, tag = 'output window, operand 0, single buffered']
    %12 = vsyncpa [#allocation3], 0
    %13 = vsyncpa [#allocation6], 0
    %14 = vsyncpa [#allocation4], 0
    // Predicated region
    $region2: #{tpu_custom_call.1} parent=1 // pred_check
      _
    $region3: #{tpu_custom_call.1} parent=1 // pred_check_branch
      %16 = sbr.rel (0) target = $region5
    $region4: #{tpu_custom_call.1} parent=1 // pred_region
      _
    $region5: #{tpu_custom_call.1} parent=1 // pred_fallthru
      _
    // Predicated region
    $region6: #{tpu_custom_call.1} parent=1 // pred_check
      _
    $region7: #{tpu_custom_call.1} parent=1 // pred_check_branch
      %18 = sbr.rel (0) target = $region9
    $region8: #{tpu_custom_call.1} parent=1 // pred_region
      _
    $region9: #{tpu_custom_call.1} parent=1 // pred_fallthru
      _
    // Predicated region
    $region10: #{tpu_custom_call.1} parent=1 // pred_check
      _
    $region11: #{tpu_custom_call.1} parent=1 // pred_check_branch
      %20 = sbr.rel (0) target = $region13
    $region12: #{tpu_custom_call.1} parent=1 // pred_region
      _
    $region13: #{tpu_custom_call.1} parent=1 // pred_fallthru
      _
    // Predicated region
    $region14: #{tpu_custom_call.1} parent=1 // pred_check
      _
    $region15: #{tpu_custom_call.1} parent=1 // pred_check_branch
      %22 = sbr.rel (0) target = $region17
    $region16: #{tpu_custom_call.1} parent=1 // pred_region
      %s24 = ssub.s32 4096, 4096
      %25 = vsyncadd [#allocation3], %s24
      %s26 = sshll.u32 [#allocation2], 4
      %s27 = int_to_ptr.vmem [resolvable:$true] %s26
      %32 = dma.hbm_to_vmem [thread:$0]  %s3, 4096, %s27, [#allocation3], 64, 64, 4
    $region17: #{tpu_custom_call.1} parent=1 // pred_fallthru
      _
    // Predicated region
    $region18: #{tpu_custom_call.1} parent=1 // pred_check
      _
    $region19: #{tpu_custom_call.1} parent=1 // pred_check_branch
      %34 = sbr.rel (0) target = $region21
    $region20: #{tpu_custom_call.1} parent=1 // pred_region
      _
    $region21: #{tpu_custom_call.1} parent=1 // pred_fallthru
      _
    // Predicated region
    $region22: #{tpu_custom_call.1} parent=1 // pred_check
      _
    $region23: #{tpu_custom_call.1} parent=1 // pred_check_branch
      %36 = sbr.rel (0) target = $region25
    $region24: #{tpu_custom_call.1} parent=1 // pred_region
      %s38 = ssub.s32 1024, 1024
      %39 = vsyncadd [#allocation6], %s38
      %s40 = sshll.u32 [#allocation5], 4
      %s41 = int_to_ptr.vmem [resolvable:$true] %s40
      %46 = dma.hbm_to_vmem [thread:$0]  %s5, 1024, %s41, [#allocation6], 64, 64, 4
    $region25: #{tpu_custom_call.1} parent=1 // pred_fallthru
      _
    // Predicated region
    $region26: #{tpu_custom_call.1} parent=1 // pred_check
      _
    $region27: #{tpu_custom_call.1} parent=1 // pred_check_branch
      %48 = sbr.rel (0) target = $region29
    $region28: #{tpu_custom_call.1} parent=1 // pred_region
      _
    $region29: #{tpu_custom_call.1} parent=1 // pred_fallthru
      _
    // Predicated region
    $region30: #{tpu_custom_call.1} parent=1 // pred_check
      _
    $region31: #{tpu_custom_call.1} parent=1 // pred_check_branch
      %50 = sbr.rel (0) target = $region33
    $region32: #{tpu_custom_call.1} parent=1 // pred_region
      %51 = dma.done [#allocation3], 4096
    $region33: #{tpu_custom_call.1} parent=1 // pred_fallthru
      _
    // Predicated region
    $region34: #{tpu_custom_call.1} parent=1 // pred_check
      _
    $region35: #{tpu_custom_call.1} parent=1 // pred_check_branch
      %53 = sbr.rel (0) target = $region37
    $region36: #{tpu_custom_call.1} parent=1 // pred_region
      %54 = dma.done [#allocation6], 1024
    $region37: #{tpu_custom_call.1} parent=1 // pred_fallthru
      _
    %v56 = vld [vmem:[%s0] sm:$0xff]
    %v57 = vpack.c.bf16 %v56, %v56
    %v58 = vld [vmem:[%s1] sm:$0x3]
    %vm59 = vcmask 31744
    %v61 = vsel %vm59, %v57, 0
    %vm63 = vcmask 1041408
    %v65 = vsel %vm63, %v58, 0
    %67 = vmatprep.subr.bf16.mxu0 0
    %68 = vmatpush1.bf16.msra.mxu0 %v65
    %69 = vmatprep.subr.bf16.mxu0 0
    %70 = vmatpush1.bf16.msra.mxu0 0
    %71 = vmatprep.subr.bf16.mxu0 0
    %72 = vmatpush1.bf16.msra.mxu0 0
    %73 = vmatprep.subr.bf16.mxu0 0
    %74 = vmatpush1.bf16.msra.mxu0 0
    %75 = vmatprep.subr.bf16.mxu0 0
    %76 = vmatpush1.bf16.msra.mxu0 0
    %77 = vmatprep.subr.bf16.mxu0 0
    %78 = vmatpush1.bf16.msra.mxu0 0
    %79 = vmatprep.subr.bf16.mxu0 0
    %80 = vmatpush1.bf16.msra.mxu0 0
    %81 = vmatprep.subr.bf16.mxu0 0
    %82 = vmatpush1.bf16.msra.mxu0 0
    %83 = vmatprep.subr.bf16.mxu0 0
    %84 = vmatpush1.bf16.msra.mxu0 0
    %85 = vmatprep.subr.bf16.mxu0 0
    %86 = vmatpush1.bf16.msra.mxu0 0
    %87 = vmatprep.subr.bf16.mxu0 0
    %88 = vmatpush1.bf16.msra.mxu0 0
    %89 = vmatprep.subr.bf16.mxu0 0
    %90 = vmatpush1.bf16.msra.mxu0 0
    %91 = vmatprep.subr.bf16.mxu0 0
    %92 = vmatpush1.bf16.msra.mxu0 0
    %93 = vmatprep.subr.bf16.mxu0 0
    %94 = vmatpush1.bf16.msra.mxu0 0
    %95 = vmatprep.subr.bf16.mxu0 0
    %96 = vmatpush1.bf16.msra.mxu0 0
    %97 = vmatprep.subr.bf16.mxu0 0
    %98 = vmatpush1.bf16.msra.mxu0 0
    %99 = vmatprep.mubr.bf16.mxu0 0
    %100 = vmatmul.mubr.bf16.gmra.mrb[0].mxu0 %v61
    %v101 = vpop.f32.mrb[0].mxu0
    %v102 = vadd.f32 0.0, %v101
    %v103 = vpop.f32.mrb[0].mxu0
    %v104 = vpop.f32.mrb[0].mxu0
    %v105 = vpop.f32.mrb[0].mxu0
    %106 = vdwg.mxu0
    %v107 = vpack.c.bf16 %v102, %v102
    %v108 = vld [vmem:[%s2] sm:$0x1]
    %v109 = vpack.c.bf16 %v108, %v108
    %v111 = vpack.i.b16 %v109, %v109
    %v113 = vlaneseq
    %v114 = vshrl.u32 %v113, 7
    %v115 = vsub.s32 0, %v114
    %v116 = vrot.slane %v111, %v115
    %v117 = vadd.bf16 %v107, %v116
    %v118 = vld [vmem:[#allocation2] sm:$0xf]
    %v119 = vld [vmem:[#allocation2 + $0x4] sm:$0xf]
    %v120 = vld [vmem:[#allocation2 + $0x8] sm:$0xf]
    %v121 = vld [vmem:[#allocation2 + $0xc] sm:$0xf]
    %v122 = vld [vmem:[#allocation2 + $0x10] sm:$0xf]
    %v123 = vld [vmem:[#allocation2 + $0x14] sm:$0xf]
    %v124 = vld [vmem:[#allocation2 + $0x18] sm:$0xf]
    %v125 = vld [vmem:[#allocation2 + $0x1c] sm:$0xf]
    %v126 = vld [vmem:[#allocation2 + $0x20] sm:$0xf]
    %v127 = vld [vmem:[#allocation2 + $0x24] sm:$0xf]
    %v128 = vld [vmem:[#allocation2 + $0x28] sm:$0xf]
    %v129 = vld [vmem:[#allocation2 + $0x2c] sm:$0xf]
    %v130 = vld [vmem:[#allocation2 + $0x30] sm:$0xf]
    %v131 = vld [vmem:[#allocation2 + $0x34] sm:$0xf]
    %v132 = vld [vmem:[#allocation2 + $0x38] sm:$0xf]
    %v133 = vld [vmem:[#allocation2 + $0x3c] sm:$0xf]
    %v150 = vunpack.c.l.b16 %v118
    %v151 = vunpack.c.l.b16 %v119
    %v152 = vunpack.c.l.b16 %v120
    %v153 = vunpack.c.l.b16 %v121
    %v154 = vunpack.c.l.b16 %v122
    %v155 = vunpack.c.l.b16 %v123
    %v156 = vunpack.c.l.b16 %v124
    %v157 = vunpack.c.l.b16 %v125
    %v158 = vunpack.c.l.b16 %v126
    %v159 = vunpack.c.l.b16 %v127
    %v160 = vunpack.c.l.b16 %v128
    %v161 = vunpack.c.l.b16 %v129
    %v162 = vunpack.c.l.b16 %v130
    %v163 = vunpack.c.l.b16 %v131
    %v164 = vunpack.c.l.b16 %v132
    %v165 = vunpack.c.l.b16 %v133
    %v166 = vpack.c.b16 %v151, %v150
    %v167 = vpack.c.b16 %v153, %v152
    %v168 = vpack.c.b16 %v155, %v154
    %v169 = vpack.c.b16 %v157, %v156
    %v170 = vpack.c.b16 %v159, %v158
    %v171 = vpack.c.b16 %v161, %v160
    %v172 = vpack.c.b16 %v163, %v162
    %v173 = vpack.c.b16 %v165, %v164
    %182 = vmatprep.subr.bf16.mxu0 0
    %183 = vmatpush1.bf16.msra.mxu0 %v166
    %184 = vmatprep.subr.bf16.mxu0 0
    %185 = vmatpush1.bf16.msra.mxu0 %v167
    %186 = vmatprep.subr.bf16.mxu0 0
    %187 = vmatpush1.bf16.msra.mxu0 %v168
    %188 = vmatprep.subr.bf16.mxu0 0
    %189 = vmatpush1.bf16.msra.mxu0 %v169
    %190 = vmatprep.subr.bf16.mxu0 0
    %191 = vmatpush1.bf16.msra.mxu0 %v170
    %192 = vmatprep.subr.bf16.mxu0 0
    %193 = vmatpush1.bf16.msra.mxu0 %v171
    %194 = vmatprep.subr.bf16.mxu0 0
    %195 = vmatpush1.bf16.msra.mxu0 %v172
    %196 = vmatprep.subr.bf16.mxu0 0
    %197 = vmatpush1.bf16.msra.mxu0 %v173
    %198 = vmatprep.subr.bf16.mxu0 0
    %199 = vmatpush1.bf16.msra.mxu0 0
    %200 = vmatprep.subr.bf16.mxu0 0
    %201 = vmatpush1.bf16.msra.mxu0 0
    %202 = vmatprep.subr.bf16.mxu0 0
    %203 = vmatpush1.bf16.msra.mxu0 0
    %204 = vmatprep.subr.bf16.mxu0 0
    %205 = vmatpush1.bf16.msra.mxu0 0
    %206 = vmatprep.subr.bf16.mxu0 0
    %207 = vmatpush1.bf16.msra.mxu0 0
    %208 = vmatprep.subr.bf16.mxu0 0
    %209 = vmatpush1.bf16.msra.mxu0 0
    %210 = vmatprep.subr.bf16.mxu0 0
    %211 = vmatpush1.bf16.msra.mxu0 0
    %212 = vmatprep.subr.bf16.mxu0 0
    %213 = vmatpush1.bf16.msra.mxu0 0
    %214 = vmatprep.mubr.bf16.mxu0 0
    %215 = vmatmul.mubr.bf16.gmra.mrb[0].mxu0 %v117
    %v216 = vpop.f32.mrb[0].mxu0
    %v217 = vadd.f32 0.0, %v216
    %v218 = vpop.f32.mrb[0].mxu0
    %v219 = vpop.f32.mrb[0].mxu0
    %v220 = vpop.f32.mrb[0].mxu0
    %221 = vdwg.mxu0
    %v222 = vpack.c.bf16 %v217, %v217
    %v223 = vld [vmem:[%s4] sm:$0x1]
    %v224 = vpack.c.bf16 %v223, %v223
    %v226 = vpack.i.b16 %v224, %v224
    %v228 = vlaneseq
    %v229 = vshrl.u32 %v228, 7
    %v230 = vsub.s32 0, %v229
    %v231 = vrot.slane %v226, %v230
    %v232 = vadd.bf16 %v222, %v231
    %v233 = vmax.bf16 %v232, 0
    %v234 = vadd.bf16 %v117, %v233
    %s235 = scalar_lea.vmem [#allocation2], 64
    %v236 = vld [vmem:[%s235] sm:$0xf]
    %v237 = vld [vmem:[%s235 + $0x4] sm:$0xf]
    %v238 = vld [vmem:[%s235 + $0x8] sm:$0xf]
    %v239 = vld [vmem:[%s235 + $0xc] sm:$0xf]
    %v240 = vld [vmem:[%s235 + $0x10] sm:$0xf]
    %v241 = vld [vmem:[%s235 + $0x14] sm:$0xf]
    %v242 = vld [vmem:[%s235 + $0x18] sm:$0xf]
    %v243 = vld [vmem:[%s235 + $0x1c] sm:$0xf]
    %v244 = vld [vmem:[%s235 + $0x20] sm:$0xf]
    %v245 = vld [vmem:[%s235 + $0x24] sm:$0xf]
    %v246 = vld [vmem:[%s235 + $0x28] sm:$0xf]
    %v247 = vld [vmem:[%s235 + $0x2c] sm:$0xf]
    %v248 = vld [vmem:[%s235 + $0x30] sm:$0xf]
    %v249 = vld [vmem:[%s235 + $0x34] sm:$0xf]
    %v250 = vld [vmem:[%s235 + $0x38] sm:$0xf]
    %v251 = vld [vmem:[%s235 + $0x3c] sm:$0xf]
    %v268 = vunpack.c.l.b16 %v236
    %v269 = vunpack.c.l.b16 %v237
    %v270 = vunpack.c.l.b16 %v238
    %v271 = vunpack.c.l.b16 %v239
    %v272 = vunpack.c.l.b16 %v240
    %v273 = vunpack.c.l.b16 %v241
    %v274 = vunpack.c.l.b16 %v242
    %v275 = vunpack.c.l.b16 %v243
    %v276 = vunpack.c.l.b16 %v244
    %v277 = vunpack.c.l.b16 %v245
    %v278 = vunpack.c.l.b16 %v246
    %v279 = vunpack.c.l.b16 %v247
    %v280 = vunpack.c.l.b16 %v248
    %v281 = vunpack.c.l.b16 %v249
    %v282 = vunpack.c.l.b16 %v250
    %v283 = vunpack.c.l.b16 %v251
    %v284 = vpack.c.b16 %v269, %v268
    %v285 = vpack.c.b16 %v271, %v270
    %v286 = vpack.c.b16 %v273, %v272
    %v287 = vpack.c.b16 %v275, %v274
    %v288 = vpack.c.b16 %v277, %v276
    %v289 = vpack.c.b16 %v279, %v278
    %v290 = vpack.c.b16 %v281, %v280
    %v291 = vpack.c.b16 %v283, %v282
    %300 = vmatprep.subr.bf16.mxu0 0
    %301 = vmatpush1.bf16.msra.mxu0 %v284
    %302 = vmatprep.subr.bf16.mxu0 0
    %303 = vmatpush1.bf16.msra.mxu0 %v285
    %304 = vmatprep.subr.bf16.mxu0 0
    %305 = vmatpush1.bf16.msra.mxu0 %v286
    %306 = vmatprep.subr.bf16.mxu0 0
    %307 = vmatpush1.bf16.msra.mxu0 %v287
    %308 = vmatprep.subr.bf16.mxu0 0
    %309 = vmatpush1.bf16.msra.mxu0 %v288
    %310 = vmatprep.subr.bf16.mxu0 0
    %311 = vmatpush1.bf16.msra.mxu0 %v289
    %312 = vmatprep.subr.bf16.mxu0 0
    %313 = vmatpush1.bf16.msra.mxu0 %v290
    %314 = vmatprep.subr.bf16.mxu0 0
    %315 = vmatpush1.bf16.msra.mxu0 %v291
    %316 = vmatprep.subr.bf16.mxu0 0
    %317 = vmatpush1.bf16.msra.mxu0 0
    %318 = vmatprep.subr.bf16.mxu0 0
    %319 = vmatpush1.bf16.msra.mxu0 0
    %320 = vmatprep.subr.bf16.mxu0 0
    %321 = vmatpush1.bf16.msra.mxu0 0
    %322 = vmatprep.subr.bf16.mxu0 0
    %323 = vmatpush1.bf16.msra.mxu0 0
    %324 = vmatprep.subr.bf16.mxu0 0
    %325 = vmatpush1.bf16.msra.mxu0 0
    %326 = vmatprep.subr.bf16.mxu0 0
    %327 = vmatpush1.bf16.msra.mxu0 0
    %328 = vmatprep.subr.bf16.mxu0 0
    %329 = vmatpush1.bf16.msra.mxu0 0
    %330 = vmatprep.subr.bf16.mxu0 0
    %331 = vmatpush1.bf16.msra.mxu0 0
    %332 = vmatprep.mubr.bf16.mxu0 0
    %333 = vmatmul.mubr.bf16.gmra.mrb[0].mxu0 %v234
    %v334 = vpop.f32.mrb[0].mxu0
    %v335 = vadd.f32 0.0, %v334
    %v336 = vpop.f32.mrb[0].mxu0
    %v337 = vpop.f32.mrb[0].mxu0
    %v338 = vpop.f32.mrb[0].mxu0
    %339 = vdwg.mxu0
    %v340 = vpack.c.bf16 %v335, %v335
    %s341 = scalar_lea.vmem %s4, 1
    %v342 = vld [vmem:[%s341] sm:$0x1]
    %v343 = vpack.c.bf16 %v342, %v342
    %v345 = vpack.i.b16 %v343, %v343
    %v347 = vlaneseq
    %v348 = vshrl.u32 %v347, 7
    %v349 = vsub.s32 0, %v348
    %v350 = vrot.slane %v345, %v349
    %v351 = vadd.bf16 %v340, %v350
    %v352 = vmax.bf16 %v351, 0
    %v353 = vadd.bf16 %v234, %v352
    %s354 = scalar_lea.vmem [#allocation2], 128
    %v355 = vld [vmem:[%s354] sm:$0xf]
    %v356 = vld [vmem:[%s354 + $0x4] sm:$0xf]
    %v357 = vld [vmem:[%s354 + $0x8] sm:$0xf]
    %v358 = vld [vmem:[%s354 + $0xc] sm:$0xf]
    %v359 = vld [vmem:[%s354 + $0x10] sm:$0xf]
    %v360 = vld [vmem:[%s354 + $0x14] sm:$0xf]
    %v361 = vld [vmem:[%s354 + $0x18] sm:$0xf]
    %v362 = vld [vmem:[%s354 + $0x1c] sm:$0xf]
    %v363 = vld [vmem:[%s354 + $0x20] sm:$0xf]
    %v364 = vld [vmem:[%s354 + $0x24] sm:$0xf]
    %v365 = vld [vmem:[%s354 + $0x28] sm:$0xf]
    %v366 = vld [vmem:[%s354 + $0x2c] sm:$0xf]
    %v367 = vld [vmem:[%s354 + $0x30] sm:$0xf]
    %v368 = vld [vmem:[%s354 + $0x34] sm:$0xf]
    %v369 = vld [vmem:[%s354 + $0x38] sm:$0xf]
    %v370 = vld [vmem:[%s354 + $0x3c] sm:$0xf]
    %v387 = vunpack.c.l.b16 %v355
    %v388 = vunpack.c.l.b16 %v356
    %v389 = vunpack.c.l.b16 %v357
    %v390 = vunpack.c.l.b16 %v358
    %v391 = vunpack.c.l.b16 %v359
    %v392 = vunpack.c.l.b16 %v360
    %v393 = vunpack.c.l.b16 %v361
    %v394 = vunpack.c.l.b16 %v362
    %v395 = vunpack.c.l.b16 %v363
    %v396 = vunpack.c.l.b16 %v364
    %v397 = vunpack.c.l.b16 %v365
    %v398 = vunpack.c.l.b16 %v366
    %v399 = vunpack.c.l.b16 %v367
    %v400 = vunpack.c.l.b16 %v368
    %v401 = vunpack.c.l.b16 %v369
    %v402 = vunpack.c.l.b16 %v370
    %v403 = vpack.c.b16 %v388, %v387
    %v404 = vpack.c.b16 %v390, %v389
    %v405 = vpack.c.b16 %v392, %v391
    %v406 = vpack.c.b16 %v394, %v393
    %v407 = vpack.c.b16 %v396, %v395
    %v408 = vpack.c.b16 %v398, %v397
    %v409 = vpack.c.b16 %v400, %v399
    %v410 = vpack.c.b16 %v402, %v401
    %419 = vmatprep.subr.bf16.mxu0 0
    %420 = vmatpush1.bf16.msra.mxu0 %v403
    %421 = vmatprep.subr.bf16.mxu0 0
    %422 = vmatpush1.bf16.msra.mxu0 %v404
    %423 = vmatprep.subr.bf16.mxu0 0
    %424 = vmatpush1.bf16.msra.mxu0 %v405
    %425 = vmatprep.subr.bf16.mxu0 0
    %426 = vmatpush1.bf16.msra.mxu0 %v406
    %427 = vmatprep.subr.bf16.mxu0 0
    %428 = vmatpush1.bf16.msra.mxu0 %v407
    %429 = vmatprep.subr.bf16.mxu0 0
    %430 = vmatpush1.bf16.msra.mxu0 %v408
    %431 = vmatprep.subr.bf16.mxu0 0
    %432 = vmatpush1.bf16.msra.mxu0 %v409
    %433 = vmatprep.subr.bf16.mxu0 0
    %434 = vmatpush1.bf16.msra.mxu0 %v410
    %435 = vmatprep.subr.bf16.mxu0 0
    %436 = vmatpush1.bf16.msra.mxu0 0
    %437 = vmatprep.subr.bf16.mxu0 0
    %438 = vmatpush1.bf16.msra.mxu0 0
    %439 = vmatprep.subr.bf16.mxu0 0
    %440 = vmatpush1.bf16.msra.mxu0 0
    %441 = vmatprep.subr.bf16.mxu0 0
    %442 = vmatpush1.bf16.msra.mxu0 0
    %443 = vmatprep.subr.bf16.mxu0 0
    %444 = vmatpush1.bf16.msra.mxu0 0
    %445 = vmatprep.subr.bf16.mxu0 0
    %446 = vmatpush1.bf16.msra.mxu0 0
    %447 = vmatprep.subr.bf16.mxu0 0
    %448 = vmatpush1.bf16.msra.mxu0 0
    %449 = vmatprep.subr.bf16.mxu0 0
    %450 = vmatpush1.bf16.msra.mxu0 0
    %451 = vmatprep.mubr.bf16.mxu0 0
    %452 = vmatmul.mubr.bf16.gmra.mrb[0].mxu0 %v353
    %v453 = vpop.f32.mrb[0].mxu0
    %v454 = vadd.f32 0.0, %v453
    %v455 = vpop.f32.mrb[0].mxu0
    %v456 = vpop.f32.mrb[0].mxu0
    %v457 = vpop.f32.mrb[0].mxu0
    %458 = vdwg.mxu0
    %v459 = vpack.c.bf16 %v454, %v454
    %s460 = scalar_lea.vmem %s4, 2
    %v461 = vld [vmem:[%s460] sm:$0x1]
    %v462 = vpack.c.bf16 %v461, %v461
    %v464 = vpack.i.b16 %v462, %v462
    %v466 = vlaneseq
    %v467 = vshrl.u32 %v466, 7
    %v468 = vsub.s32 0, %v467
    %v469 = vrot.slane %v464, %v468
    %v470 = vadd.bf16 %v459, %v469
    %v471 = vmax.bf16 %v470, 0
    %v472 = vadd.bf16 %v353, %v471
    %s473 = scalar_lea.vmem [#allocation2], 192
    %v474 = vld [vmem:[%s473] sm:$0xf]
    %v475 = vld [vmem:[%s473 + $0x4] sm:$0xf]
    %v476 = vld [vmem:[%s473 + $0x8] sm:$0xf]
    %v477 = vld [vmem:[%s473 + $0xc] sm:$0xf]
    %v478 = vld [vmem:[%s473 + $0x10] sm:$0xf]
    %v479 = vld [vmem:[%s473 + $0x14] sm:$0xf]
    %v480 = vld [vmem:[%s473 + $0x18] sm:$0xf]
    %v481 = vld [vmem:[%s473 + $0x1c] sm:$0xf]
    %v482 = vld [vmem:[%s473 + $0x20] sm:$0xf]
    %v483 = vld [vmem:[%s473 + $0x24] sm:$0xf]
    %v484 = vld [vmem:[%s473 + $0x28] sm:$0xf]
    %v485 = vld [vmem:[%s473 + $0x2c] sm:$0xf]
    %v486 = vld [vmem:[%s473 + $0x30] sm:$0xf]
    %v487 = vld [vmem:[%s473 + $0x34] sm:$0xf]
    %v488 = vld [vmem:[%s473 + $0x38] sm:$0xf]
    %v489 = vld [vmem:[%s473 + $0x3c] sm:$0xf]
    %v506 = vunpack.c.l.b16 %v474
    %v507 = vunpack.c.l.b16 %v475
    %v508 = vunpack.c.l.b16 %v476
    %v509 = vunpack.c.l.b16 %v477
    %v510 = vunpack.c.l.b16 %v478
    %v511 = vunpack.c.l.b16 %v479
    %v512 = vunpack.c.l.b16 %v480
    %v513 = vunpack.c.l.b16 %v481
    %v514 = vunpack.c.l.b16 %v482
    %v515 = vunpack.c.l.b16 %v483
    %v516 = vunpack.c.l.b16 %v484
    %v517 = vunpack.c.l.b16 %v485
    %v518 = vunpack.c.l.b16 %v486
    %v519 = vunpack.c.l.b16 %v487
    %v520 = vunpack.c.l.b16 %v488
    %v521 = vunpack.c.l.b16 %v489
    %v522 = vpack.c.b16 %v507, %v506
    %v523 = vpack.c.b16 %v509, %v508
    %v524 = vpack.c.b16 %v511, %v510
    %v525 = vpack.c.b16 %v513, %v512
    %v526 = vpack.c.b16 %v515, %v514
    %v527 = vpack.c.b16 %v517, %v516
    %v528 = vpack.c.b16 %v519, %v518
    %v529 = vpack.c.b16 %v521, %v520
    %538 = vmatprep.subr.bf16.mxu0 0
    %539 = vmatpush1.bf16.msra.mxu0 %v522
    %540 = vmatprep.subr.bf16.mxu0 0
    %541 = vmatpush1.bf16.msra.mxu0 %v523
    %542 = vmatprep.subr.bf16.mxu0 0
    %543 = vmatpush1.bf16.msra.mxu0 %v524
    %544 = vmatprep.subr.bf16.mxu0 0
    %545 = vmatpush1.bf16.msra.mxu0 %v525
    %546 = vmatprep.subr.bf16.mxu0 0
    %547 = vmatpush1.bf16.msra.mxu0 %v526
    %548 = vmatprep.subr.bf16.mxu0 0
    %549 = vmatpush1.bf16.msra.mxu0 %v527
    %550 = vmatprep.subr.bf16.mxu0 0
    %551 = vmatpush1.bf16.msra.mxu0 %v528
    %552 = vmatprep.subr.bf16.mxu0 0
    %553 = vmatpush1.bf16.msra.mxu0 %v529
    %554 = vmatprep.subr.bf16.mxu0 0
    %555 = vmatpush1.bf16.msra.mxu0 0
    %556 = vmatprep.subr.bf16.mxu0 0
    %557 = vmatpush1.bf16.msra.mxu0 0
    %558 = vmatprep.subr.bf16.mxu0 0
    %559 = vmatpush1.bf16.msra.mxu0 0
    %560 = vmatprep.subr.bf16.mxu0 0
    %561 = vmatpush1.bf16.msra.mxu0 0
    %562 = vmatprep.subr.bf16.mxu0 0
    %563 = vmatpush1.bf16.msra.mxu0 0
    %564 = vmatprep.subr.bf16.mxu0 0
    %565 = vmatpush1.bf16.msra.mxu0 0
    %566 = vmatprep.subr.bf16.mxu0 0
    %567 = vmatpush1.bf16.msra.mxu0 0
    %568 = vmatprep.subr.bf16.mxu0 0
    %569 = vmatpush1.bf16.msra.mxu0 0
    %570 = vmatprep.mubr.bf16.mxu0 0
    %571 = vmatmul.mubr.bf16.gmra.mrb[0].mxu0 %v472
    %v572 = vpop.f32.mrb[0].mxu0
    %v573 = vadd.f32 0.0, %v572
    %v574 = vpop.f32.mrb[0].mxu0
    %v575 = vpop.f32.mrb[0].mxu0
    %v576 = vpop.f32.mrb[0].mxu0
    %577 = vdwg.mxu0
    %v578 = vpack.c.bf16 %v573, %v573
    %s579 = scalar_lea.vmem %s4, 3
    %v580 = vld [vmem:[%s579] sm:$0x1]
    %v581 = vpack.c.bf16 %v580, %v580
    %v583 = vpack.i.b16 %v581, %v581
    %v585 = vlaneseq
    %v586 = vshrl.u32 %v585, 7
    %v587 = vsub.s32 0, %v586
    %v588 = vrot.slane %v583, %v587
    %v589 = vadd.bf16 %v578, %v588
    %v590 = vmax.bf16 %v589, 0
    %v591 = vadd.bf16 %v472, %v590
    %v592 = vld [vmem:[#allocation5] sm:$0xf]
    %v593 = vld [vmem:[#allocation5 + $0x4] sm:$0xf]
    %v594 = vld [vmem:[#allocation5 + $0x8] sm:$0xf]
    %v595 = vld [vmem:[#allocation5 + $0xc] sm:$0xf]
    %v596 = vld [vmem:[#allocation5 + $0x10] sm:$0xf]
    %v597 = vld [vmem:[#allocation5 + $0x14] sm:$0xf]
    %v598 = vld [vmem:[#allocation5 + $0x18] sm:$0xf]
    %v599 = vld [vmem:[#allocation5 + $0x1c] sm:$0xf]
    %v600 = vld [vmem:[#allocation5 + $0x20] sm:$0xf]
    %v601 = vld [vmem:[#allocation5 + $0x24] sm:$0xf]
    %v602 = vld [vmem:[#allocation5 + $0x28] sm:$0xf]
    %v603 = vld [vmem:[#allocation5 + $0x2c] sm:$0xf]
    %v604 = vld [vmem:[#allocation5 + $0x30] sm:$0xf]
    %v605 = vld [vmem:[#allocation5 + $0x34] sm:$0xf]
    %v606 = vld [vmem:[#allocation5 + $0x38] sm:$0xf]
    %v607 = vld [vmem:[#allocation5 + $0x3c] sm:$0xf]
    %v624 = vunpack.c.l.b16 %v592
    %v625 = vunpack.c.l.b16 %v593
    %v626 = vunpack.c.l.b16 %v594
    %v627 = vunpack.c.l.b16 %v595
    %v628 = vunpack.c.l.b16 %v596
    %v629 = vunpack.c.l.b16 %v597
    %v630 = vunpack.c.l.b16 %v598
    %v631 = vunpack.c.l.b16 %v599
    %v632 = vunpack.c.l.b16 %v600
    %v633 = vunpack.c.l.b16 %v601
    %v634 = vunpack.c.l.b16 %v602
    %v635 = vunpack.c.l.b16 %v603
    %v636 = vunpack.c.l.b16 %v604
    %v637 = vunpack.c.l.b16 %v605
    %v638 = vunpack.c.l.b16 %v606
    %v639 = vunpack.c.l.b16 %v607
    %v640 = vpack.c.b16 %v625, %v624
    %v641 = vpack.c.b16 %v627, %v626
    %v642 = vpack.c.b16 %v629, %v628
    %v643 = vpack.c.b16 %v631, %v630
    %v644 = vpack.c.b16 %v633, %v632
    %v645 = vpack.c.b16 %v635, %v634
    %v646 = vpack.c.b16 %v637, %v636
    %v647 = vpack.c.b16 %v639, %v638
    %656 = vmatprep.subr.bf16.mxu0 0
    %657 = vmatpush1.bf16.msra.mxu0 %v640
    %658 = vmatprep.subr.bf16.mxu0 0
    %659 = vmatpush1.bf16.msra.mxu0 %v641
    %660 = vmatprep.subr.bf16.mxu0 0
    %661 = vmatpush1.bf16.msra.mxu0 %v642
    %662 = vmatprep.subr.bf16.mxu0 0
    %663 = vmatpush1.bf16.msra.mxu0 %v643
    %664 = vmatprep.subr.bf16.mxu0 0
    %665 = vmatpush1.bf16.msra.mxu0 %v644
    %666 = vmatprep.subr.bf16.mxu0 0
    %667 = vmatpush1.bf16.msra.mxu0 %v645
    %668 = vmatprep.subr.bf16.mxu0 0
    %669 = vmatpush1.bf16.msra.mxu0 %v646
    %670 = vmatprep.subr.bf16.mxu0 0
    %671 = vmatpush1.bf16.msra.mxu0 %v647
    %672 = vmatprep.subr.bf16.mxu0 0
    %673 = vmatpush1.bf16.msra.mxu0 0
    %674 = vmatprep.subr.bf16.mxu0 0
    %675 = vmatpush1.bf16.msra.mxu0 0
    %676 = vmatprep.subr.bf16.mxu0 0
    %677 = vmatpush1.bf16.msra.mxu0 0
    %678 = vmatprep.subr.bf16.mxu0 0
    %679 = vmatpush1.bf16.msra.mxu0 0
    %680 = vmatprep.subr.bf16.mxu0 0
    %681 = vmatpush1.bf16.msra.mxu0 0
    %682 = vmatprep.subr.bf16.mxu0 0
    %683 = vmatpush1.bf16.msra.mxu0 0
    %684 = vmatprep.subr.bf16.mxu0 0
    %685 = vmatpush1.bf16.msra.mxu0 0
    %686 = vmatprep.subr.bf16.mxu0 0
    %687 = vmatpush1.bf16.msra.mxu0 0
    %688 = vmatprep.mubr.bf16.mxu0 0
    %689 = vmatmul.mubr.bf16.gmra.mrb[0].mxu0 %v591
    %v690 = vpop.f32.mrb[0].mxu0
    %v691 = vadd.f32 0.0, %v690
    %v692 = vpop.f32.mrb[0].mxu0
    %v693 = vpop.f32.mrb[0].mxu0
    %v694 = vpop.f32.mrb[0].mxu0
    %695 = vdwg.mxu0
    %v696 = vld [vmem:[%s6] sm:$0x1]
    %v698 = vlaneseq
    %v699 = vshrl.u32 %v698, 7
    %v700 = vsub.s32 0, %v699
    %v701 = vrot.slane %v696, %v700
    %v703 = vadd.f32 %v691, %v701
    %vm704 = vcmask 130048
    %705 = vst.msk [vmem:[#allocation7] sm:$0xff] %vm704, %v703
    // Predicated region
    $region38: #{tpu_custom_call.1} parent=1 // pred_check
      _
    $region39: #{tpu_custom_call.1} parent=1 // pred_check_branch
      %707 = sbr.rel (0) target = $region41
    $region40: #{tpu_custom_call.1} parent=1 // pred_region
      %s709 = ssub.s32 128, 128
      %710 = vsyncadd [#allocation4], %s709
      %s712 = sshll.u32 [#allocation7], 4
      %s713 = int_to_ptr.vmem [resolvable:$true] %s712
      %715 = dma.vmem_to_hbm [thread:$0]  %s713, 128, %s7, [#allocation4]
    $region41: #{tpu_custom_call.1} parent=1 // pred_fallthru
      _
    // Predicated region
    $region42: #{tpu_custom_call.1} parent=1 // pred_check
      _
    $region43: #{tpu_custom_call.1} parent=1 // pred_check_branch
      %717 = sbr.rel (0) target = $region45
    $region44: #{tpu_custom_call.1} parent=1 // pred_region
      %718 = dma.done [#allocation4], 128
    $region45: #{tpu_custom_call.1} parent=1 // pred_fallthru
      _
    %719 = vsyncpa [#allocation3], 1
    %720 = vsyncpa [#allocation6], 1
    %721 = vsyncpa [#allocation4], 1

</llo_original>
